<compile_context>
chip_gen: v5e
topology: v5e:2x2
jax: 0.10.0
libtpu: 0.0.40
codegen_flags: <defaults>
</compile_context>

<pallas_src>
import functools

import jax
import jax.numpy as jnp
from jax.experimental import pallas as pl
from jax.experimental.pallas import tpu as pltpu


def _sdpa_dropout_kernel(scale_factor, inv_keep, keep_threshold,
                         q_ref, k_ref, v_ref, bits_ref, o_ref):
    """One (batch, query-tile) per grid step."""
    # Fold the softmax scale into q: (TQ, D) multiply instead of an (TQ, S) one.
    q = q_ref[0].astype(jnp.float32) * jnp.float32(scale_factor)   # (TQ, D)
    k = k_ref[0]                                                   # (S, D)
    v = v_ref[0]                                                   # (S, D)

    # scores = q @ k^T, contracting over D directly (no transpose/relayout of k).
    s = jax.lax.dot_general(
        q.astype(jnp.bfloat16), k.astype(jnp.bfloat16),
        dimension_numbers=(((1,), (1,)), ((), ())),
        preferred_element_type=jnp.float32)                        # (TQ, S)

    # Numerically stable softmax along the key axis; fold 1/keep_prob into the
    # per-row normalizer so no extra (TQ, S) multiply is needed for dropout rescale.
    m = jnp.max(s, axis=-1, keepdims=True)
    e = jnp.exp(s - m)
    denom = jnp.sum(e, axis=-1, keepdims=True)
    # Per-row (TQ, 1) divide; portable everywhere (pl.reciprocal(approx=True) would
    # only save a handful of VALU ops on a (TQ,1) tensor).
    inv = jnp.float32(inv_keep) / denom

    # Dropout keep-test in integer domain: keep iff bits < keep_prob * 2^32.
    rbits = bits_ref[0]                                            # (TQ, S) uint32
    keep = rbits < jnp.uint32(keep_threshold)
    p_drop = jnp.where(keep, e * inv, jnp.float32(0.0))            # (TQ, S)

    # output = dropout(softmax) @ v  (bf16 operands, f32 accumulate on the MXU).
    out = jax.lax.dot_general(
        p_drop.astype(jnp.bfloat16), v.astype(jnp.bfloat16),
        dimension_numbers=(((1,), (0,)), ((), ())),
        preferred_element_type=jnp.float32)                        # (TQ, D)
    o_ref[0] = out.astype(o_ref.dtype)


def sdpa_dropout(q, k, v, scale_factor=1.0, dropout_p=0.5, key=None, tq=128):
    assert q.shape == k.shape == v.shape, "q, k, v must share (B, S, D)"
    B, S, D = q.shape
    keep_prob = 1.0 - float(dropout_p)
    inv_keep = (1.0 / keep_prob) if keep_prob > 0.0 else 0.0
    # uint32 threshold so the in-kernel keep-test is a single integer compare.
    keep_threshold = min(int(keep_prob * (1 << 32)), (1 << 32) - 1)

    if key is None:
        key = jax.random.PRNGKey(0)
    # Dropout randomness generated host-side (portable; mask is tiling-invariant).
    bits = jax.random.bits(key, (B, S, S), dtype=jnp.uint32)

    tq = min(tq, S)
    assert S % tq == 0, "seq length must be divisible by the query tile"

    kernel = functools.partial(_sdpa_dropout_kernel, float(scale_factor),
                               float(inv_keep), keep_threshold)

    return pl.pallas_call(
        kernel,
        out_shape=jax.ShapeDtypeStruct((B, S, D), jnp.float32),
        grid_spec=pltpu.PrefetchScalarGridSpec(
            num_scalar_prefetch=0,
            grid=(B, S // tq),
            in_specs=[
                pl.BlockSpec((1, tq, D), lambda b, i: (b, i, 0)),   # q tile
                pl.BlockSpec((1, S, D), lambda b, i: (b, 0, 0)),    # full k
                pl.BlockSpec((1, S, D), lambda b, i: (b, 0, 0)),    # full v
                pl.BlockSpec((1, tq, S), lambda b, i: (b, i, 0)),   # dropout bits tile
            ],
            out_specs=pl.BlockSpec((1, tq, D), lambda b, i: (b, i, 0)),
        ),
        compiler_params=pltpu.CompilerParams(
            dimension_semantics=("parallel", "parallel"),
            vmem_limit_bytes=64 * 1024 * 1024,
        ),
    )(q, k, v, bits)


if __name__ == "__main__":
    key = jax.random.PRNGKey(0)
    kq, kk, kv, kd = jax.random.split(key, 4)
    B, S, D = 2, 256, 64   # small shapes consistent with the module's (batch, 256, 64)
    q = jax.random.normal(kq, (B, S, D), dtype=jnp.float32)
    k = jax.random.normal(kk, (B, S, D), dtype=jnp.float32)
    v = jax.random.normal(kv, (B, S, D), dtype=jnp.float32)

    out = sdpa_dropout(q, k, v, scale_factor=1.0, dropout_p=0.5, key=kd)
    jax.block_until_ready(out)
    assert out.shape == (B, S, D)
    assert bool(jnp.all(jnp.isfinite(out)))
    print("KERNEL_OK")
</pallas_src>

<mosaic_0001>
module attributes {stable_mosaic.version = 11 : i64} {
  func.func @_sdpa_dropout_kernel(%arg0: i32, %arg1: i32, %arg2: memref<1x128x64xf32, #tpu.memory_space<vmem>>, %arg3: memref<1x256x64xf32, #tpu.memory_space<vmem>>, %arg4: memref<1x256x64xf32, #tpu.memory_space<vmem>>, %arg5: memref<1x128x256xi32, #tpu.memory_space<vmem>>, %arg6: memref<1x128x64xf32, #tpu.memory_space<vmem>>) attributes {dimension_semantics = [#tpu.dimension_semantics<parallel>, #tpu.dimension_semantics<parallel>], iteration_bounds = array<i64: 2, 2>, scalar_prefetch = 0 : i64, scratch_operands = 0 : i64, tpu.core_type = #tpu.core_type<tc>, window_params = [{transform_indices = @transform_0, window_bounds = array<i64: 1, 128, 64>}, {transform_indices = @transform_1, window_bounds = array<i64: 1, 256, 64>}, {transform_indices = @transform_2, window_bounds = array<i64: 1, 256, 64>}, {transform_indices = @transform_3, window_bounds = array<i64: 1, 128, 256>}, {transform_indices = @transform_4, window_bounds = array<i64: 1, 128, 64>}]} {
    %c0 = arith.constant 0 : index
    %c0_0 = arith.constant 0 : index
    %c0_1 = arith.constant 0 : index
    %0 = vector.load %arg2[%c0, %c0_0, %c0_1] : memref<1x128x64xf32, #tpu.memory_space<vmem>>, vector<1x128x64xf32>
    %1 = vector.shape_cast %0 : vector<1x128x64xf32> to vector<128x64xf32>
    %cst = arith.constant 1.000000e+00 : f32
    %2 = vector.broadcast %cst : f32 to vector<128x64xf32>
    %3 = arith.mulf %1, %2 : vector<128x64xf32>
    %c0_2 = arith.constant 0 : index
    %c0_3 = arith.constant 0 : index
    %c0_4 = arith.constant 0 : index
    %4 = vector.load %arg3[%c0_2, %c0_3, %c0_4] : memref<1x256x64xf32, #tpu.memory_space<vmem>>, vector<1x256x64xf32>
    %5 = vector.shape_cast %4 : vector<1x256x64xf32> to vector<256x64xf32>
    %c0_5 = arith.constant 0 : index
    %c0_6 = arith.constant 0 : index
    %c0_7 = arith.constant 0 : index
    %6 = vector.load %arg4[%c0_5, %c0_6, %c0_7] : memref<1x256x64xf32, #tpu.memory_space<vmem>>, vector<1x256x64xf32>
    %7 = vector.shape_cast %6 : vector<1x256x64xf32> to vector<256x64xf32>
    %8 = arith.truncf %3 : vector<128x64xf32> to vector<128x64xbf16>
    %9 = arith.truncf %5 : vector<256x64xf32> to vector<256x64xbf16>
    %cst_8 = arith.constant dense<0.000000e+00> : vector<128x256xf32>
    %10 = tpu.matmul %8, %9, %cst_8 {dimension_numbers = #tpu.dot_dimension_numbers<[1], [1], [0], [0], [0, 0, 1, 0], [], []>} : vector<128x64xbf16>, vector<256x64xbf16>, vector<128x256xf32> -> vector<128x256xf32>
    %cst_9 = arith.constant dense<0xFF800000> : vector<128xf32>
    %11 = vector.multi_reduction <maximumf>, %10, %cst_9 [1] : vector<128x256xf32> to vector<128xf32>
    %12 = vector.shape_cast %11 : vector<128xf32> to vector<128x1xf32>
    %13 = vector.broadcast %12 : vector<128x1xf32> to vector<128x256xf32>
    %14 = arith.subf %10, %13 : vector<128x256xf32>
    %15 = math.exp %14 : vector<128x256xf32>
    %cst_10 = arith.constant dense<0.000000e+00> : vector<128xf32>
    %16 = vector.multi_reduction <add>, %15, %cst_10 [1] : vector<128x256xf32> to vector<128xf32>
    %17 = vector.shape_cast %16 : vector<128xf32> to vector<128x1xf32>
    %cst_11 = arith.constant 2.000000e+00 : f32
    %18 = vector.broadcast %cst_11 : f32 to vector<128x1xf32>
    %19 = arith.divf %18, %17 : vector<128x1xf32>
    %c0_12 = arith.constant 0 : index
    %c0_13 = arith.constant 0 : index
    %c0_14 = arith.constant 0 : index
    %20 = vector.load %arg5[%c0_12, %c0_13, %c0_14] : memref<1x128x256xi32, #tpu.memory_space<vmem>>, vector<1x128x256xi32>
    %21 = vector.shape_cast %20 : vector<1x128x256xi32> to vector<128x256xi32>
    %c-2147483648_i32 = arith.constant -2147483648 : i32
    %22 = vector.broadcast %c-2147483648_i32 : i32 to vector<128x256xi32>
    %23 = arith.cmpi ult, %21, %22 : vector<128x256xi32>
    %24 = vector.broadcast %19 : vector<128x1xf32> to vector<128x256xf32>
    %25 = arith.mulf %15, %24 : vector<128x256xf32>
    %cst_15 = arith.constant 0.000000e+00 : f32
    %26 = vector.broadcast %cst_15 : f32 to vector<128x256xf32>
    %27 = arith.select %23, %25, %26 : vector<128x256xi1>, vector<128x256xf32>
    %28 = arith.truncf %27 : vector<128x256xf32> to vector<128x256xbf16>
    %29 = arith.truncf %7 : vector<256x64xf32> to vector<256x64xbf16>
    %cst_16 = arith.constant dense<0.000000e+00> : vector<128x64xf32>
    %30 = tpu.matmul %28, %29, %cst_16 {dimension_numbers = #tpu.dot_dimension_numbers<[1], [0], [0], [1], [0, 0, 1, 1], [], []>} : vector<128x256xbf16>, vector<256x64xbf16>, vector<128x64xf32> -> vector<128x64xf32>
    %c0_17 = arith.constant 0 : index
    %c0_18 = arith.constant 0 : index
    %c0_19 = arith.constant 0 : index
    %31 = vector.load %arg6[%c0_17, %c0_18, %c0_19] : memref<1x128x64xf32, #tpu.memory_space<vmem>>, vector<1x128x64xf32>
    %32 = vector.shape_cast %31 : vector<1x128x64xf32> to vector<128x64xf32>
    %33 = vector.shape_cast %30 : vector<128x64xf32> to vector<1x128x64xf32>
    tpu.vector_store %arg6[%c0_17, %c0_18, %c0_19], %33 {strides = array<i32>} : memref<1x128x64xf32, #tpu.memory_space<vmem>>, vector<1x128x64xf32>,
    return
  }
  func.func @transform_0(%arg0: i32, %arg1: i32) -> (i32, i32, i32) {
    %c0_i32 = arith.constant 0 : i32
    %c0_i32_0 = arith.constant 0 : i32
    return %arg0, %arg1, %c0_i32 : i32, i32, i32
  }
  func.func @transform_1(%arg0: i32, %arg1: i32) -> (i32, i32, i32) {
    %c0_i32 = arith.constant 0 : i32
    %c0_i32_0 = arith.constant 0 : i32
    %c0_i32_1 = arith.constant 0 : i32
    return %arg0, %c0_i32, %c0_i32_0 : i32, i32, i32
  }
  func.func @transform_2(%arg0: i32, %arg1: i32) -> (i32, i32, i32) {
    %c0_i32 = arith.constant 0 : i32
    %c0_i32_0 = arith.constant 0 : i32
    %c0_i32_1 = arith.constant 0 : i32
    return %arg0, %c0_i32, %c0_i32_0 : i32, i32, i32
  }
  func.func @transform_3(%arg0: i32, %arg1: i32) -> (i32, i32, i32) {
    %c0_i32 = arith.constant 0 : i32
    %c0_i32_0 = arith.constant 0 : i32
    return %arg0, %arg1, %c0_i32 : i32, i32, i32
  }
  func.func @transform_4(%arg0: i32, %arg1: i32) -> (i32, i32, i32) {
    %c0_i32 = arith.constant 0 : i32
    %c0_i32_0 = arith.constant 0 : i32
    return %arg0, %arg1, %c0_i32 : i32, i32, i32
  }
}

</mosaic_0001>

<llo_original>
// kernel: tpu_custom_call.1
$region0: #{tpu_custom_call.1}
  #allocation0 [shape = 'u32[]', space=smem, size = 0x4, offset = 0x4, fixed_abs, tag = 'smem constant byte address 0x4 - core index']
  #allocation1 [shape = 'u32[72,128]{1,0:T(1,128)}', space=vmem, size = 0x9000, scoped, tag = 'internal scratch']
  %s0 = inlined_call_operand.vmem [shape: f32[2,256,64], index: 0, kind: input, shape index: {}]
  %s1 = inlined_call_operand.vmem [shape: f32[2,256,64], index: 1, kind: input, shape index: {}]
  %s2 = inlined_call_operand.vmem [shape: f32[2,256,64], index: 2, kind: input, shape index: {}]
  %s3 = inlined_call_operand.vmem [shape: u32[2,256,256], index: 3, kind: input, shape index: {}]
  %s4 = inlined_call_operand.vmem [shape: f32[2,256,64], index: 4, kind: output, shape index: {}]
  %s5 = sld [smem:[#allocation0]]
  $region49: #{tpu_custom_call.1} parent=0
    _
  %s7 = ssub.s32 1, %s5
  %s8 = scalar_select 0, %s7, %s5
  loop: start=0, step=1, limit=6
  $region2: #{tpu_custom_call.1} parent=0 // loop_pre_header
    _
  $region3: #{tpu_custom_call.1} parent=0 // loop_header
    %s10 = sphi 0, %s14
    %p11 = scmp.ge.s32.totalorder %s10, 6
    %s17 = sphi 0, %s29
    %s18 = sphi 0, %s25
    %s19 = sphi 0, %s17
    %s20 = sphi 0, %s18
    %s21 = sphi 0, %s19
    %s22 = sphi 0, %s20
    %s34 = sphi 0, %s36
    %s37 = sphi 0, %s34
    %s38 = sphi 0, %s37
    %s54 = sphi 0, %s38
    %s60 = sphi 0, %s62
    %s63 = sphi 0, %s60
    %s64 = sphi 0, %s63
    %s80 = sphi 0, %s64
    %s86 = sphi 0, %s88
    %s89 = sphi 0, %s86
    %s90 = sphi 0, %s89
    %s106 = sphi 0, %s90
    %s114 = sphi 0, %s116
    %s117 = sphi 0, %s114
    %s118 = sphi 0, %s117
    %s134 = sphi 0, %s118
    %s142 = sphi 0, %s144
    %s145 = sphi 0, %s142
    %s146 = sphi 0, %s145
    %s162 = sphi 0, %s146
  $region4: #{tpu_custom_call.1} parent=0 // loop_header_branch
    %13 = sbr.rel (%p11) target = $region8
  $region5: #{tpu_custom_call.1} parent=0 // loop_body
    %s15 = ssub.s32 %s10, 1
    %s16 = ssub.s32 %s10, 2
    %s23 = sadd.s32 1, %s18
    %p24 = scmp.ge.s32.totalorder %s23, 2
    %s25 = scalar_select %p24, 0, %s23
    %s26 = sadd.s32 1, %s17
    %s27 = scalar_select %p24, %s26, %s17
    %p28 = scmp.ge.s32.totalorder %s27, 2
    %s29 = scalar_select %p28, 0, %s27
    %s30 = ssub.s32 %s17, %s29
    %s31 = ssub.s32 %s18, %s25
    %s32 = sor.u32 %s30, %s31
    %p33 = scmp.eq.s32.totalorder %s32, 0
    %s35 = sadd.s32 %s34, 1
    %s36 = scalar_select %p33, %s34, %s35
    %p39 = pneg %p33
    %p40 = scmp.eq.s32.totalorder %s10, 3
    %p41 = por %p39, %p40
    %p42 = scmp.ne.s32.totalorder %s34, %s37
    %p43 = scmp.eq.s32.totalorder %s10, 0
    %p44 = por %p42, %p43
    %p45 = scmp.ne.s32.totalorder %s34, %s37
    %p46 = scmp.eq.s32.totalorder %s15, 3
    %p47 = por %p45, %p46
    %p48 = scmp.ne.s32.totalorder %s37, %s38
    %p49 = scmp.eq.s32.totalorder %s15, 0
    %p50 = por %p48, %p49
    %p51 = scmp.ne.s32.totalorder %s37, %s38
    %p52 = scmp.eq.s32.totalorder %s16, 3
    %p53 = por %p51, %p52
    %p55 = scmp.ne.s32.totalorder %s38, %s54
    %p56 = scmp.eq.s32.totalorder %s16, 0
    %p57 = por %p55, %p56
    %s58 = ssub.s32 %s17, %s29
    %p59 = scmp.eq.s32.totalorder %s58, 0
    %s61 = sadd.s32 %s60, 1
    %s62 = scalar_select %p59, %s60, %s61
    %p65 = pneg %p59
    %p66 = scmp.eq.s32.totalorder %s10, 3
    %p67 = por %p65, %p66
    %p68 = scmp.ne.s32.totalorder %s60, %s63
    %p69 = scmp.eq.s32.totalorder %s10, 0
    %p70 = por %p68, %p69
    %p71 = scmp.ne.s32.totalorder %s60, %s63
    %p72 = scmp.eq.s32.totalorder %s15, 3
    %p73 = por %p71, %p72
    %p74 = scmp.ne.s32.totalorder %s63, %s64
    %p75 = scmp.eq.s32.totalorder %s15, 0
    %p76 = por %p74, %p75
    %p77 = scmp.ne.s32.totalorder %s63, %s64
    %p78 = scmp.eq.s32.totalorder %s16, 3
    %p79 = por %p77, %p78
    %p81 = scmp.ne.s32.totalorder %s64, %s80
    %p82 = scmp.eq.s32.totalorder %s16, 0
    %p83 = por %p81, %p82
    %s84 = ssub.s32 %s17, %s29
    %p85 = scmp.eq.s32.totalorder %s84, 0
    %s87 = sadd.s32 %s86, 1
    %s88 = scalar_select %p85, %s86, %s87
    %p91 = pneg %p85
    %p92 = scmp.eq.s32.totalorder %s10, 3
    %p93 = por %p91, %p92
    %p94 = scmp.ne.s32.totalorder %s86, %s89
    %p95 = scmp.eq.s32.totalorder %s10, 0
    %p96 = por %p94, %p95
    %p97 = scmp.ne.s32.totalorder %s86, %s89
    %p98 = scmp.eq.s32.totalorder %s15, 3
    %p99 = por %p97, %p98
    %p100 = scmp.ne.s32.totalorder %s89, %s90
    %p101 = scmp.eq.s32.totalorder %s15, 0
    %p102 = por %p100, %p101
    %p103 = scmp.ne.s32.totalorder %s89, %s90
    %p104 = scmp.eq.s32.totalorder %s16, 3
    %p105 = por %p103, %p104
    %p107 = scmp.ne.s32.totalorder %s90, %s106
    %p108 = scmp.eq.s32.totalorder %s16, 0
    %p109 = por %p107, %p108
    %s110 = ssub.s32 %s17, %s29
    %s111 = ssub.s32 %s18, %s25
    %s112 = sor.u32 %s110, %s111
    %p113 = scmp.eq.s32.totalorder %s112, 0
    %s115 = sadd.s32 %s114, 1
    %s116 = scalar_select %p113, %s114, %s115
    %p119 = pneg %p113
    %p120 = scmp.eq.s32.totalorder %s10, 3
    %p121 = por %p119, %p120
    %p122 = scmp.ne.s32.totalorder %s114, %s117
    %p123 = scmp.eq.s32.totalorder %s10, 0
    %p124 = por %p122, %p123
    %p125 = scmp.ne.s32.totalorder %s114, %s117
    %p126 = scmp.eq.s32.totalorder %s15, 3
    %p127 = por %p125, %p126
    %p128 = scmp.ne.s32.totalorder %s117, %s118
    %p129 = scmp.eq.s32.totalorder %s15, 0
    %p130 = por %p128, %p129
    %p131 = scmp.ne.s32.totalorder %s117, %s118
    %p132 = scmp.eq.s32.totalorder %s16, 3
    %p133 = por %p131, %p132
    %p135 = scmp.ne.s32.totalorder %s118, %s134
    %p136 = scmp.eq.s32.totalorder %s16, 0
    %p137 = por %p135, %p136
    %s138 = ssub.s32 %s17, %s29
    %s139 = ssub.s32 %s18, %s25
    %s140 = sor.u32 %s138, %s139
    %p141 = scmp.eq.s32.totalorder %s140, 0
    %s143 = sadd.s32 %s142, 1
    %s144 = scalar_select %p141, %s142, %s143
    %p147 = pneg %p141
    %p148 = scmp.eq.s32.totalorder %s10, 3
    %p149 = por %p147, %p148
    %p150 = scmp.ne.s32.totalorder %s142, %s145
    %p151 = scmp.eq.s32.totalorder %s10, 0
    %p152 = por %p150, %p151
    %p153 = scmp.ne.s32.totalorder %s142, %s145
    %p154 = scmp.eq.s32.totalorder %s15, 3
    %p155 = por %p153, %p154
    %p156 = scmp.ne.s32.totalorder %s145, %s146
    %p157 = scmp.eq.s32.totalorder %s15, 0
    %p158 = por %p156, %p157
    %p159 = scmp.ne.s32.totalorder %s145, %s146
    %p160 = scmp.eq.s32.totalorder %s16, 3
    %p161 = por %p159, %p160
    %p163 = scmp.ne.s32.totalorder %s146, %s162
    %p164 = scmp.eq.s32.totalorder %s16, 0
    %p165 = por %p163, %p164
    %p166 = scmp.le.s32.totalorder 1, %s10
    %p167 = scmp.lt.s32.totalorder %s10, 5
    %p168 = pnand %p166, %p167
    %p169 = pneg %p168
    // Predicated region
    $region9: #{tpu_custom_call.1} parent=5 // pred_check
      _
    $region10: #{tpu_custom_call.1} parent=5 // pred_check_branch
      %171 = sbr.rel (%p168) target = $region12
    $region11: #{tpu_custom_call.1} parent=5 // pred_region
      %s172 = ssub.s32 %s10, 1
    $region12: #{tpu_custom_call.1} parent=5 // pred_fallthru
      _
    %p173 = scmp.lt.s32.totalorder %s10, 4
    // Predicated region
    $region13: #{tpu_custom_call.1} parent=5 // pred_check
      %p174 = pneg %p173
    $region14: #{tpu_custom_call.1} parent=5 // pred_check_branch
      %176 = sbr.rel (%p174) target = $region16
    $region15: #{tpu_custom_call.1} parent=5 // pred_region
      // Predicated region
      $region17: #{tpu_custom_call.1} parent=15 // pred_check
        %p177 = pneg %p44
      $region18: #{tpu_custom_call.1} parent=15 // pred_check_branch
        %179 = sbr.rel (%p177) target = $region20
      $region19: #{tpu_custom_call.1} parent=15 // pred_region
        %s180 = smul.u32 16, %s18
        %p181 = scmp.lt.s32.totalorder %s17, 1
        %s182 = scalar_select %p181, %s17, 1
        %p183 = scmp.lt.s32.totalorder %s180, 31
        %s184 = scalar_select %p183, %s180, 31
        %s185 = smul.addr %s182, 32
        %s186 = sadd.s32 %s184, %s185
        %s187 = smul.addr %s186, 8
        %s188 = scalar_lea.vmem %s0, %s187
        %s189 = smul.u32 16, %s18
      $region20: #{tpu_custom_call.1} parent=15 // pred_fallthru
        _
      // Predicated region
      $region21: #{tpu_custom_call.1} parent=15 // pred_check
        %p190 = pneg %p70
      $region22: #{tpu_custom_call.1} parent=15 // pred_check_branch
        %192 = sbr.rel (%p190) target = $region24
      $region23: #{tpu_custom_call.1} parent=15 // pred_region
        %p193 = scmp.lt.s32.totalorder %s17, 1
        %s194 = scalar_select %p193, %s17, 1
        %s195 = smul.addr %s194, 32
        %s196 = smul.addr %s195, 8
        %s197 = scalar_lea.vmem %s1, %s196
      $region24: #{tpu_custom_call.1} parent=15 // pred_fallthru
        _
      // Predicated region
      $region25: #{tpu_custom_call.1} parent=15 // pred_check
        %p198 = pneg %p96
      $region26: #{tpu_custom_call.1} parent=15 // pred_check_branch
        %200 = sbr.rel (%p198) target = $region28
      $region27: #{tpu_custom_call.1} parent=15 // pred_region
        %p201 = scmp.lt.s32.totalorder %s17, 1
        %s202 = scalar_select %p201, %s17, 1
        %s203 = smul.addr %s202, 32
        %s204 = smul.addr %s203, 8
        %s205 = scalar_lea.vmem %s2, %s204
      $region28: #{tpu_custom_call.1} parent=15 // pred_fallthru
        _
      // Predicated region
      $region29: #{tpu_custom_call.1} parent=15 // pred_check
        %p206 = pneg %p124
      $region30: #{tpu_custom_call.1} parent=15 // pred_check_branch
        %208 = sbr.rel (%p206) target = $region32
      $region31: #{tpu_custom_call.1} parent=15 // pred_region
        %s209 = smul.u32 16, %s18
        %p210 = scmp.lt.s32.totalorder %s17, 1
        %s211 = scalar_select %p210, %s17, 1
        %p212 = scmp.lt.s32.totalorder %s209, 31
        %s213 = scalar_select %p212, %s209, 31
        %s214 = smul.addr %s213, 2
        %s215 = smul.addr %s211, 64
        %s216 = sadd.s32 %s214, %s215
        %s217 = smul.addr %s216, 8
        %s218 = scalar_lea.vmem %s3, %s217
        %s219 = smul.u32 16, %s18
      $region32: #{tpu_custom_call.1} parent=15 // pred_fallthru
        _
    $region16: #{tpu_custom_call.1} parent=5 // pred_fallthru
      _
    %p220 = scmp.le.s32.totalorder 1, %s10
    %p221 = scmp.lt.s32.totalorder %s10, 5
    %p222 = pnand %p220, %p221
    %p223 = pneg %p222
    // Predicated region
    $region33: #{tpu_custom_call.1} parent=5 // pred_check
      _
    $region34: #{tpu_custom_call.1} parent=5 // pred_check_branch
      %225 = sbr.rel (%p222) target = $region36
    $region35: #{tpu_custom_call.1} parent=5 // pred_region
      %s226 = ssub.s32 %s10, 1
      %s227 = smul.u32 16, %s20
      %p228 = scmp.lt.s32.totalorder %s19, 1
      %s229 = scalar_select %p228, %s19, 1
      %p230 = scmp.lt.s32.totalorder %s227, 31
      %s231 = scalar_select %p230, %s227, 31
      %s232 = smul.addr %s229, 32
      %s233 = sadd.s32 %s231, %s232
      %s234 = smul.addr %s233, 8
      %s235 = scalar_lea.vmem %s0, %s234
      %p236 = pneg %p50
      %p237 = pneg %p47
      %p238 = scmp.lt.s32.totalorder %s19, 1
      %s239 = scalar_select %p238, %s19, 1
      %s240 = smul.addr %s239, 32
      %s241 = smul.addr %s240, 8
      %s242 = scalar_lea.vmem %s1, %s241
      %p243 = pneg %p76
      %p244 = pneg %p73
      %p245 = scmp.lt.s32.totalorder %s19, 1
      %s246 = scalar_select %p245, %s19, 1
      %s247 = smul.addr %s246, 32
      %s248 = smul.addr %s247, 8
      %s249 = scalar_lea.vmem %s2, %s248
      %p250 = pneg %p102
      %p251 = pneg %p99
      %s252 = smul.u32 16, %s20
      %p253 = scmp.lt.s32.totalorder %s19, 1
      %s254 = scalar_select %p253, %s19, 1
      %p255 = scmp.lt.s32.totalorder %s252, 31
      %s256 = scalar_select %p255, %s252, 31
      %s257 = smul.addr %s256, 2
      %s258 = smul.addr %s254, 64
      %s259 = sadd.s32 %s257, %s258
      %s260 = smul.addr %s259, 8
      %s261 = scalar_lea.vmem %s3, %s260
      %p262 = pneg %p130
      %p263 = pneg %p127
      %p264 = pneg %p158
      %p265 = pneg %p155
      %s266 = smul.u32 16, %s20
      %p267 = scmp.lt.s32.totalorder %s19, 1
      %s268 = scalar_select %p267, %s19, 1
      %p269 = scmp.lt.s32.totalorder %s266, 31
      %s270 = scalar_select %p269, %s266, 31
      %s271 = smul.addr %s268, 32
      %s272 = sadd.s32 %s270, %s271
      %s273 = smul.addr %s272, 8
      %s274 = scalar_lea.vmem %s4, %s273
      %s275 = smul.u32 16, %s20
      %p276 = scmp.lt.s32.totalorder %s19, 1
      %s277 = scalar_select %p276, %s19, 1
      %p278 = scmp.lt.s32.totalorder %s275, 31
      %s279 = scalar_select %p278, %s275, 31
      %s280 = smul.addr %s277, 32
      %s281 = sadd.s32 %s279, %s280
      %s282 = smul.addr %s281, 8
      %s283 = scalar_lea.vmem %s0, %s282
      %s284 = smul.u32 16, %s20
      %p285 = scmp.lt.s32.totalorder %s19, 1
      %s286 = scalar_select %p285, %s19, 1
      %s287 = smul.addr %s286, 32
      %s288 = smul.addr %s287, 8
      %s289 = scalar_lea.vmem %s1, %s288
      %p290 = scmp.lt.s32.totalorder %s19, 1
      %s291 = scalar_select %p290, %s19, 1
      %s292 = smul.addr %s291, 32
      %s293 = smul.addr %s292, 8
      %s294 = scalar_lea.vmem %s2, %s293
      %s295 = smul.u32 16, %s20
      %p296 = scmp.lt.s32.totalorder %s19, 1
      %s297 = scalar_select %p296, %s19, 1
      %p298 = scmp.lt.s32.totalorder %s295, 31
      %s299 = scalar_select %p298, %s295, 31
      %s300 = smul.addr %s299, 2
      %s301 = smul.addr %s297, 64
      %s302 = sadd.s32 %s300, %s301
      %s303 = smul.addr %s302, 8
      %s304 = scalar_lea.vmem %s3, %s303
      %s305 = smul.u32 16, %s20
      %s306 = smul.u32 16, %s20
      %p307 = scmp.lt.s32.totalorder %s19, 1
      %s308 = scalar_select %p307, %s19, 1
      %p309 = scmp.lt.s32.totalorder %s306, 31
      %s310 = scalar_select %p309, %s306, 31
      %s311 = smul.addr %s308, 32
      %s312 = sadd.s32 %s310, %s311
      %s313 = smul.addr %s312, 8
      %s314 = scalar_lea.vmem %s4, %s313
      %s315 = smul.u32 16, %s20
      %v316 = vld [vmem:[%s283] sm:$0xff]
      %v317 = vld [vmem:[%s283 + $0x8] sm:$0xff]
      %v318 = vld [vmem:[%s283 + $0x10] sm:$0xff]
      %v319 = vld [vmem:[%s283 + $0x18] sm:$0xff]
      %v320 = vld [vmem:[%s283 + $0x20] sm:$0xff]
      %v321 = vld [vmem:[%s283 + $0x28] sm:$0xff]
      %v322 = vld [vmem:[%s283 + $0x30] sm:$0xff]
      %v323 = vld [vmem:[%s283 + $0x38] sm:$0xff]
      %v324 = vld [vmem:[%s283 + $0x40] sm:$0xff]
      %v325 = vld [vmem:[%s283 + $0x48] sm:$0xff]
      %v326 = vld [vmem:[%s283 + $0x50] sm:$0xff]
      %v327 = vld [vmem:[%s283 + $0x58] sm:$0xff]
      %v328 = vld [vmem:[%s283 + $0x60] sm:$0xff]
      %v329 = vld [vmem:[%s283 + $0x68] sm:$0xff]
      %v330 = vld [vmem:[%s283 + $0x70] sm:$0xff]
      %v331 = vld [vmem:[%s283 + $0x78] sm:$0xff]
      %v332 = vld [vmem:[%s289] sm:$0xff]
      %v333 = vld [vmem:[%s289 + $0x8] sm:$0xff]
      %v334 = vld [vmem:[%s289 + $0x10] sm:$0xff]
      %v335 = vld [vmem:[%s289 + $0x18] sm:$0xff]
      %v336 = vld [vmem:[%s289 + $0x20] sm:$0xff]
      %v337 = vld [vmem:[%s289 + $0x28] sm:$0xff]
      %v338 = vld [vmem:[%s289 + $0x30] sm:$0xff]
      %v339 = vld [vmem:[%s289 + $0x38] sm:$0xff]
      %v340 = vld [vmem:[%s289 + $0x40] sm:$0xff]
      %v341 = vld [vmem:[%s289 + $0x48] sm:$0xff]
      %v342 = vld [vmem:[%s289 + $0x50] sm:$0xff]
      %v343 = vld [vmem:[%s289 + $0x58] sm:$0xff]
      %v344 = vld [vmem:[%s289 + $0x60] sm:$0xff]
      %v345 = vld [vmem:[%s289 + $0x68] sm:$0xff]
      %v346 = vld [vmem:[%s289 + $0x70] sm:$0xff]
      %v347 = vld [vmem:[%s289 + $0x78] sm:$0xff]
      %v348 = vld [vmem:[%s289 + $0x80] sm:$0xff]
      %v349 = vld [vmem:[%s289 + $0x88] sm:$0xff]
      %v350 = vld [vmem:[%s289 + $0x90] sm:$0xff]
      %v351 = vld [vmem:[%s289 + $0x98] sm:$0xff]
      %v352 = vld [vmem:[%s289 + $0xa0] sm:$0xff]
      %v353 = vld [vmem:[%s289 + $0xa8] sm:$0xff]
      %v354 = vld [vmem:[%s289 + $0xb0] sm:$0xff]
      %v355 = vld [vmem:[%s289 + $0xb8] sm:$0xff]
      %v356 = vld [vmem:[%s289 + $0xc0] sm:$0xff]
      %v357 = vld [vmem:[%s289 + $0xc8] sm:$0xff]
      %v358 = vld [vmem:[%s289 + $0xd0] sm:$0xff]
      %v359 = vld [vmem:[%s289 + $0xd8] sm:$0xff]
      %v360 = vld [vmem:[%s289 + $0xe0] sm:$0xff]
      %v361 = vld [vmem:[%s289 + $0xe8] sm:$0xff]
      %v362 = vld [vmem:[%s289 + $0xf0] sm:$0xff]
      %v363 = vld [vmem:[%s289 + $0xf8] sm:$0xff]
      %v364 = vld [vmem:[%s294] sm:$0xff]
      %v365 = vld [vmem:[%s294 + $0x8] sm:$0xff]
      %v366 = vld [vmem:[%s294 + $0x10] sm:$0xff]
      %v367 = vld [vmem:[%s294 + $0x18] sm:$0xff]
      %v368 = vld [vmem:[%s294 + $0x20] sm:$0xff]
      %v369 = vld [vmem:[%s294 + $0x28] sm:$0xff]
      %v370 = vld [vmem:[%s294 + $0x30] sm:$0xff]
      %v371 = vld [vmem:[%s294 + $0x38] sm:$0xff]
      %v372 = vld [vmem:[%s294 + $0x40] sm:$0xff]
      %v373 = vld [vmem:[%s294 + $0x48] sm:$0xff]
      %v374 = vld [vmem:[%s294 + $0x50] sm:$0xff]
      %v375 = vld [vmem:[%s294 + $0x58] sm:$0xff]
      %v376 = vld [vmem:[%s294 + $0x60] sm:$0xff]
      %v377 = vld [vmem:[%s294 + $0x68] sm:$0xff]
      %v378 = vld [vmem:[%s294 + $0x70] sm:$0xff]
      %v379 = vld [vmem:[%s294 + $0x78] sm:$0xff]
      %v380 = vld [vmem:[%s294 + $0x80] sm:$0xff]
      %v381 = vld [vmem:[%s294 + $0x88] sm:$0xff]
      %v382 = vld [vmem:[%s294 + $0x90] sm:$0xff]
      %v383 = vld [vmem:[%s294 + $0x98] sm:$0xff]
      %v384 = vld [vmem:[%s294 + $0xa0] sm:$0xff]
      %v385 = vld [vmem:[%s294 + $0xa8] sm:$0xff]
      %v386 = vld [vmem:[%s294 + $0xb0] sm:$0xff]
      %v387 = vld [vmem:[%s294 + $0xb8] sm:$0xff]
      %v388 = vld [vmem:[%s294 + $0xc0] sm:$0xff]
      %v389 = vld [vmem:[%s294 + $0xc8] sm:$0xff]
      %v390 = vld [vmem:[%s294 + $0xd0] sm:$0xff]
      %v391 = vld [vmem:[%s294 + $0xd8] sm:$0xff]
      %v392 = vld [vmem:[%s294 + $0xe0] sm:$0xff]
      %v393 = vld [vmem:[%s294 + $0xe8] sm:$0xff]
      %v394 = vld [vmem:[%s294 + $0xf0] sm:$0xff]
      %v395 = vld [vmem:[%s294 + $0xf8] sm:$0xff]
      %v396 = vpack.c.bf16 %v317, %v316
      %v397 = vpack.c.bf16 %v319, %v318
      %v398 = vpack.c.bf16 %v321, %v320
      %v399 = vpack.c.bf16 %v323, %v322
      %v400 = vpack.c.bf16 %v325, %v324
      %v401 = vpack.c.bf16 %v327, %v326
      %v402 = vpack.c.bf16 %v329, %v328
      %v403 = vpack.c.bf16 %v331, %v330
      %v404 = vpack.c.bf16 %v333, %v332
      %v405 = vpack.c.bf16 %v335, %v334
      %v406 = vpack.c.bf16 %v337, %v336
      %v407 = vpack.c.bf16 %v339, %v338
      %v408 = vpack.c.bf16 %v341, %v340
      %v409 = vpack.c.bf16 %v343, %v342
      %v410 = vpack.c.bf16 %v345, %v344
      %v411 = vpack.c.bf16 %v347, %v346
      %v412 = vpack.c.bf16 %v349, %v348
      %v413 = vpack.c.bf16 %v351, %v350
      %v414 = vpack.c.bf16 %v353, %v352
      %v415 = vpack.c.bf16 %v355, %v354
      %v416 = vpack.c.bf16 %v357, %v356
      %v417 = vpack.c.bf16 %v359, %v358
      %v418 = vpack.c.bf16 %v361, %v360
      %v419 = vpack.c.bf16 %v363, %v362
      %vm420 = vcmask 523264
      %v422 = vsel %vm420, %v396, 0
      %v425 = vsel %vm420, %v397, 0
      %v428 = vsel %vm420, %v398, 0
      %v431 = vsel %vm420, %v399, 0
      %v434 = vsel %vm420, %v400, 0
      %v437 = vsel %vm420, %v401, 0
      %v440 = vsel %vm420, %v402, 0
      %v443 = vsel %vm420, %v403, 0
      %v446 = vsel %vm420, %v404, 0
      %v449 = vsel %vm420, %v405, 0
      %v452 = vsel %vm420, %v406, 0
      %v455 = vsel %vm420, %v407, 0
      %v458 = vsel %vm420, %v408, 0
      %v461 = vsel %vm420, %v409, 0
      %v464 = vsel %vm420, %v410, 0
      %v467 = vsel %vm420, %v411, 0
      %v470 = vsel %vm420, %v412, 0
      %v473 = vsel %vm420, %v413, 0
      %v476 = vsel %vm420, %v414, 0
      %v479 = vsel %vm420, %v415, 0
      %v482 = vsel %vm420, %v416, 0
      %v485 = vsel %vm420, %v417, 0
      %v488 = vsel %vm420, %v418, 0
      %v491 = vsel %vm420, %v419, 0
      %493 = vmatpush.bf16.xpose.msra.mxu0 %v467
      %494 = vmatpush.bf16.xpose.msra.mxu0 %v464
      %495 = vmatpush.bf16.xpose.msra.mxu0 %v461
      %496 = vmatpush.bf16.xpose.msra.mxu0 %v458
      %497 = vmatpush.bf16.xpose.msra.mxu0 %v455
      %498 = vmatpush.bf16.xpose.msra.mxu0 %v452
      %499 = vmatpush.bf16.xpose.msra.mxu0 %v449
      %500 = vmatpush.bf16.xpose.msra.mxu0 %v446
      %501 = vmatmul.bf16.gmra.mxu0 %v422
      %v502 = vpop.f32.mrf.mxu0
      %v503 = vadd.f32 0.0, %v502
      %v504 = vpop.f32.mrf.mxu0
      %v505 = vadd.f32 0.0, %v504
      %506 = vmatmul.bf16.gmra.mxu0 %v425
      %v507 = vpop.f32.mrf.mxu0
      %v508 = vadd.f32 0.0, %v507
      %v509 = vpop.f32.mrf.mxu0
      %v510 = vadd.f32 0.0, %v509
      %511 = vmatmul.bf16.gmra.mxu0 %v428
      %v512 = vpop.f32.mrf.mxu0
      %v513 = vadd.f32 0.0, %v512
      %v514 = vpop.f32.mrf.mxu0
      %v515 = vadd.f32 0.0, %v514
      %516 = vmatmul.bf16.gmra.mxu0 %v431
      %v517 = vpop.f32.mrf.mxu0
      %v518 = vadd.f32 0.0, %v517
      %v519 = vpop.f32.mrf.mxu0
      %v520 = vadd.f32 0.0, %v519
      %521 = vmatmul.bf16.gmra.mxu0 %v434
      %v522 = vpop.f32.mrf.mxu0
      %v523 = vadd.f32 0.0, %v522
      %v524 = vpop.f32.mrf.mxu0
      %v525 = vadd.f32 0.0, %v524
      %526 = vmatmul.bf16.gmra.mxu0 %v437
      %v527 = vpop.f32.mrf.mxu0
      %v528 = vadd.f32 0.0, %v527
      %v529 = vpop.f32.mrf.mxu0
      %v530 = vadd.f32 0.0, %v529
      %531 = vmatmul.bf16.gmra.mxu0 %v440
      %v532 = vpop.f32.mrf.mxu0
      %v533 = vadd.f32 0.0, %v532
      %v534 = vpop.f32.mrf.mxu0
      %v535 = vadd.f32 0.0, %v534
      %536 = vmatmul.bf16.gmra.mxu0 %v443
      %v537 = vpop.f32.mrf.mxu0
      %v538 = vadd.f32 0.0, %v537
      %v539 = vpop.f32.mrf.mxu0
      %v540 = vadd.f32 0.0, %v539
      %541 = vdwg.mxu0
      %542 = vmatpush.bf16.xpose.msra.mxu0 %v491
      %543 = vmatpush.bf16.xpose.msra.mxu0 %v488
      %544 = vmatpush.bf16.xpose.msra.mxu0 %v485
      %545 = vmatpush.bf16.xpose.msra.mxu0 %v482
      %546 = vmatpush.bf16.xpose.msra.mxu0 %v479
      %547 = vmatpush.bf16.xpose.msra.mxu0 %v476
      %548 = vmatpush.bf16.xpose.msra.mxu0 %v473
      %549 = vmatpush.bf16.xpose.msra.mxu0 %v470
      %550 = vmatmul.bf16.gmra.mxu0 %v422
      %v551 = vpop.f32.mrf.mxu0
      %v552 = vadd.f32 0.0, %v551
      %v553 = vpop.f32.mrf.mxu0
      %v554 = vadd.f32 0.0, %v553
      %555 = vmatmul.bf16.gmra.mxu0 %v425
      %v556 = vpop.f32.mrf.mxu0
      %v557 = vadd.f32 0.0, %v556
      %v558 = vpop.f32.mrf.mxu0
      %v559 = vadd.f32 0.0, %v558
      %560 = vmatmul.bf16.gmra.mxu0 %v428
      %v561 = vpop.f32.mrf.mxu0
      %v562 = vadd.f32 0.0, %v561
      %v563 = vpop.f32.mrf.mxu0
      %v564 = vadd.f32 0.0, %v563
      %565 = vmatmul.bf16.gmra.mxu0 %v431
      %v566 = vpop.f32.mrf.mxu0
      %v567 = vadd.f32 0.0, %v566
      %v568 = vpop.f32.mrf.mxu0
      %v569 = vadd.f32 0.0, %v568
      %570 = vmatmul.bf16.gmra.mxu0 %v434
      %v571 = vpop.f32.mrf.mxu0
      %v572 = vadd.f32 0.0, %v571
      %v573 = vpop.f32.mrf.mxu0
      %v574 = vadd.f32 0.0, %v573
      %575 = vmatmul.bf16.gmra.mxu0 %v437
      %v576 = vpop.f32.mrf.mxu0
      %v577 = vadd.f32 0.0, %v576
      %v578 = vpop.f32.mrf.mxu0
      %v579 = vadd.f32 0.0, %v578
      %580 = vmatmul.bf16.gmra.mxu0 %v440
      %v581 = vpop.f32.mrf.mxu0
      %v582 = vadd.f32 0.0, %v581
      %v583 = vpop.f32.mrf.mxu0
      %v584 = vadd.f32 0.0, %v583
      %585 = vmatmul.bf16.gmra.mxu0 %v443
      %v586 = vpop.f32.mrf.mxu0
      %v587 = vadd.f32 0.0, %v586
      %v588 = vpop.f32.mrf.mxu0
      %v589 = vadd.f32 0.0, %v588
      %590 = vdwg.mxu0
      %v591 = vmax.f32 %v503, %v552
      %592 = vmax.xlane.f32.xlu0 %v591
      %v593 = vpop.xlane.xlu0 %592
      %v594 = vmax.f32 %v505, %v554
      %595 = vmax.xlane.f32.xlu0 %v594
      %v596 = vpop.xlane.xlu0 %595
      %v597 = vmax.f32 %v508, %v557
      %598 = vmax.xlane.f32.xlu0 %v597
      %v599 = vpop.xlane.xlu0 %598
      %v600 = vmax.f32 %v510, %v559
      %601 = vmax.xlane.f32.xlu0 %v600
      %v602 = vpop.xlane.xlu0 %601
      %v603 = vmax.f32 %v513, %v562
      %604 = vmax.xlane.f32.xlu0 %v603
      %v605 = vpop.xlane.xlu0 %604
      %v606 = vmax.f32 %v515, %v564
      %607 = vmax.xlane.f32.xlu0 %v606
      %v608 = vpop.xlane.xlu0 %607
      %v609 = vmax.f32 %v518, %v567
      %610 = vmax.xlane.f32.xlu0 %v609
      %v611 = vpop.xlane.xlu0 %610
      %v612 = vmax.f32 %v520, %v569
      %613 = vmax.xlane.f32.xlu0 %v612
      %v614 = vpop.xlane.xlu0 %613
      %v615 = vmax.f32 %v523, %v572
      %616 = vmax.xlane.f32.xlu0 %v615
      %v617 = vpop.xlane.xlu0 %616
      %v618 = vmax.f32 %v525, %v574
      %619 = vmax.xlane.f32.xlu0 %v618
      %v620 = vpop.xlane.xlu0 %619
      %v621 = vmax.f32 %v528, %v577
      %622 = vmax.xlane.f32.xlu0 %v621
      %v623 = vpop.xlane.xlu0 %622
      %v624 = vmax.f32 %v530, %v579
      %625 = vmax.xlane.f32.xlu0 %v624
      %v626 = vpop.xlane.xlu0 %625
      %v627 = vmax.f32 %v533, %v582
      %628 = vmax.xlane.f32.xlu0 %v627
      %v629 = vpop.xlane.xlu0 %628
      %v630 = vmax.f32 %v535, %v584
      %631 = vmax.xlane.f32.xlu0 %v630
      %v632 = vpop.xlane.xlu0 %631
      %v633 = vmax.f32 %v538, %v587
      %634 = vmax.xlane.f32.xlu0 %v633
      %v635 = vpop.xlane.xlu0 %634
      %v636 = vmax.f32 %v540, %v589
      %637 = vmax.xlane.f32.xlu0 %v636
      %v638 = vpop.xlane.xlu0 %637
      %v639 = vsub.f32 %v503, %v593
      %v640 = vsub.f32 %v552, %v593
      %v641 = vsub.f32 %v505, %v596
      %v642 = vsub.f32 %v554, %v596
      %v643 = vsub.f32 %v508, %v599
      %v644 = vsub.f32 %v557, %v599
      %v645 = vsub.f32 %v510, %v602
      %v646 = vsub.f32 %v559, %v602
      %v647 = vsub.f32 %v513, %v605
      %v648 = vsub.f32 %v562, %v605
      %v649 = vsub.f32 %v515, %v608
      %v650 = vsub.f32 %v564, %v608
      %v651 = vsub.f32 %v518, %v611
      %v652 = vsub.f32 %v567, %v611
      %v653 = vsub.f32 %v520, %v614
      %v654 = vsub.f32 %v569, %v614
      %v655 = vsub.f32 %v523, %v617
      %v656 = vsub.f32 %v572, %v617
      %v657 = vsub.f32 %v525, %v620
      %v658 = vsub.f32 %v574, %v620
      %v659 = vsub.f32 %v528, %v623
      %v660 = vsub.f32 %v577, %v623
      %v661 = vsub.f32 %v530, %v626
      %v662 = vsub.f32 %v579, %v626
      %v663 = vsub.f32 %v533, %v629
      %v664 = vsub.f32 %v582, %v629
      %v665 = vsub.f32 %v535, %v632
      %v666 = vsub.f32 %v584, %v632
      %v667 = vsub.f32 %v538, %v635
      %v668 = vsub.f32 %v587, %v635
      %v669 = vsub.f32 %v540, %v638
      %v670 = vsub.f32 %v589, %v638
      %v671 = vmul.f32 %v639, 1.442695
      %v672 = vpow.pop %v671
      %v673 = vmul.f32 %v640, 1.442695
      %v674 = vpow.pop %v673
      %v675 = vmul.f32 %v641, 1.442695
      %v676 = vpow.pop %v675
      %v677 = vmul.f32 %v642, 1.442695
      %v678 = vpow.pop %v677
      %v679 = vmul.f32 %v643, 1.442695
      %v680 = vpow.pop %v679
      %v681 = vmul.f32 %v644, 1.442695
      %v682 = vpow.pop %v681
      %v683 = vmul.f32 %v645, 1.442695
      %v684 = vpow.pop %v683
      %v685 = vmul.f32 %v646, 1.442695
      %v686 = vpow.pop %v685
      %v687 = vmul.f32 %v647, 1.442695
      %v688 = vpow.pop %v687
      %v689 = vmul.f32 %v648, 1.442695
      %v690 = vpow.pop %v689
      %v691 = vmul.f32 %v649, 1.442695
      %v692 = vpow.pop %v691
      %v693 = vmul.f32 %v650, 1.442695
      %v694 = vpow.pop %v693
      %v695 = vmul.f32 %v651, 1.442695
      %v696 = vpow.pop %v695
      %v697 = vmul.f32 %v652, 1.442695
      %v698 = vpow.pop %v697
      %v699 = vmul.f32 %v653, 1.442695
      %v700 = vpow.pop %v699
      %v701 = vmul.f32 %v654, 1.442695
      %v702 = vpow.pop %v701
      %v703 = vmul.f32 %v655, 1.442695
      %v704 = vpow.pop %v703
      %v705 = vmul.f32 %v656, 1.442695
      %v706 = vpow.pop %v705
      %v707 = vmul.f32 %v657, 1.442695
      %v708 = vpow.pop %v707
      %v709 = vmul.f32 %v658, 1.442695
      %v710 = vpow.pop %v709
      %v711 = vmul.f32 %v659, 1.442695
      %v712 = vpow.pop %v711
      %v713 = vmul.f32 %v660, 1.442695
      %v714 = vpow.pop %v713
      %v715 = vmul.f32 %v661, 1.442695
      %v716 = vpow.pop %v715
      %v717 = vmul.f32 %v662, 1.442695
      %v718 = vpow.pop %v717
      %v719 = vmul.f32 %v663, 1.442695
      %v720 = vpow.pop %v719
      %v721 = vmul.f32 %v664, 1.442695
      %v722 = vpow.pop %v721
      %v723 = vmul.f32 %v665, 1.442695
      %v724 = vpow.pop %v723
      %v725 = vmul.f32 %v666, 1.442695
      %v726 = vpow.pop %v725
      %v727 = vmul.f32 %v667, 1.442695
      %v728 = vpow.pop %v727
      %v729 = vmul.f32 %v668, 1.442695
      %v730 = vpow.pop %v729
      %v731 = vmul.f32 %v669, 1.442695
      %v732 = vpow.pop %v731
      %v733 = vmul.f32 %v670, 1.442695
      %v734 = vpow.pop %v733
      %v735 = vadd.f32 %v672, %v674
      %736 = vadd.xlane.f32.xlu0 %v735
      %v737 = vpop.xlane.xlu0 %736
      %v738 = vadd.f32 %v676, %v678
      %739 = vadd.xlane.f32.xlu0 %v738
      %v740 = vpop.xlane.xlu0 %739
      %v741 = vadd.f32 %v680, %v682
      %742 = vadd.xlane.f32.xlu0 %v741
      %v743 = vpop.xlane.xlu0 %742
      %v744 = vadd.f32 %v684, %v686
      %745 = vadd.xlane.f32.xlu0 %v744
      %v746 = vpop.xlane.xlu0 %745
      %v747 = vadd.f32 %v688, %v690
      %748 = vadd.xlane.f32.xlu0 %v747
      %v749 = vpop.xlane.xlu0 %748
      %v750 = vadd.f32 %v692, %v694
      %751 = vadd.xlane.f32.xlu0 %v750
      %v752 = vpop.xlane.xlu0 %751
      %v753 = vadd.f32 %v696, %v698
      %754 = vadd.xlane.f32.xlu0 %v753
      %v755 = vpop.xlane.xlu0 %754
      %v756 = vadd.f32 %v700, %v702
      %757 = vadd.xlane.f32.xlu0 %v756
      %v758 = vpop.xlane.xlu0 %757
      %v759 = vadd.f32 %v704, %v706
      %760 = vadd.xlane.f32.xlu0 %v759
      %v761 = vpop.xlane.xlu0 %760
      %v762 = vadd.f32 %v708, %v710
      %763 = vadd.xlane.f32.xlu0 %v762
      %v764 = vpop.xlane.xlu0 %763
      %v765 = vadd.f32 %v712, %v714
      %766 = vadd.xlane.f32.xlu0 %v765
      %v767 = vpop.xlane.xlu0 %766
      %v768 = vadd.f32 %v716, %v718
      %769 = vadd.xlane.f32.xlu0 %v768
      %v770 = vpop.xlane.xlu0 %769
      %v771 = vadd.f32 %v720, %v722
      %772 = vadd.xlane.f32.xlu0 %v771
      %v773 = vpop.xlane.xlu0 %772
      %v774 = vadd.f32 %v724, %v726
      %775 = vadd.xlane.f32.xlu0 %v774
      %v776 = vpop.xlane.xlu0 %775
      %v777 = vadd.f32 %v728, %v730
      %778 = vadd.xlane.f32.xlu0 %v777
      %v779 = vpop.xlane.xlu0 %778
      %v780 = vadd.f32 %v732, %v734
      %781 = vadd.xlane.f32.xlu0 %v780
      %v782 = vpop.xlane.xlu0 %781
      %v783 = vrcp.pop %v737
      %v784 = vmul.f32 %v737, %v783
      %v785 = vsub.f32 1.0, %v784
      %v786 = vmul.f32 %v783, %v785
      %v787 = vadd.f32 %v783, %v786
      %vm788 = vweird.f32 %v737
      %vm789 = vweird.f32 %v783
      %vm790 = vmor %vm788, %vm789
      %v791 = vsel %vm790, %v783, %v787
      %v792 = vand.u32 2147483647, %v737
      %vm793 = vcmp.eq.f32.partialorder %v792, 8.507059e+37
      %v794 = vand.u32 %v737, 2147483648
      %v795 = vor.u32 1.1754944e-38, %v794
      %v796 = vsel %vm793, %v795, %v791
      %v797 = vmul.f32 2.0, %v796
      %v798 = vrcp.pop %v740
      %v799 = vmul.f32 %v740, %v798
      %v800 = vsub.f32 1.0, %v799
      %v801 = vmul.f32 %v798, %v800
      %v802 = vadd.f32 %v798, %v801
      %vm803 = vweird.f32 %v740
      %vm804 = vweird.f32 %v798
      %vm805 = vmor %vm803, %vm804
      %v806 = vsel %vm805, %v798, %v802
      %v807 = vand.u32 2147483647, %v740
      %vm808 = vcmp.eq.f32.partialorder %v807, 8.507059e+37
      %v809 = vand.u32 %v740, 2147483648
      %v810 = vor.u32 1.1754944e-38, %v809
      %v811 = vsel %vm808, %v810, %v806
      %v812 = vmul.f32 2.0, %v811
      %v813 = vrcp.pop %v743
      %v814 = vmul.f32 %v743, %v813
      %v815 = vsub.f32 1.0, %v814
      %v816 = vmul.f32 %v813, %v815
      %v817 = vadd.f32 %v813, %v816
      %vm818 = vweird.f32 %v743
      %vm819 = vweird.f32 %v813
      %vm820 = vmor %vm818, %vm819
      %v821 = vsel %vm820, %v813, %v817
      %v822 = vand.u32 2147483647, %v743
      %vm823 = vcmp.eq.f32.partialorder %v822, 8.507059e+37
      %v824 = vand.u32 %v743, 2147483648
      %v825 = vor.u32 1.1754944e-38, %v824
      %v826 = vsel %vm823, %v825, %v821
      %v827 = vmul.f32 2.0, %v826
      %v828 = vrcp.pop %v746
      %v829 = vmul.f32 %v746, %v828
      %v830 = vsub.f32 1.0, %v829
      %v831 = vmul.f32 %v828, %v830
      %v832 = vadd.f32 %v828, %v831
      %vm833 = vweird.f32 %v746
      %vm834 = vweird.f32 %v828
      %vm835 = vmor %vm833, %vm834
      %v836 = vsel %vm835, %v828, %v832
      %v837 = vand.u32 2147483647, %v746
      %vm838 = vcmp.eq.f32.partialorder %v837, 8.507059e+37
      %v839 = vand.u32 %v746, 2147483648
      %v840 = vor.u32 1.1754944e-38, %v839
      %v841 = vsel %vm838, %v840, %v836
      %v842 = vmul.f32 2.0, %v841
      %v843 = vrcp.pop %v749
      %v844 = vmul.f32 %v749, %v843
      %v845 = vsub.f32 1.0, %v844
      %v846 = vmul.f32 %v843, %v845
      %v847 = vadd.f32 %v843, %v846
      %vm848 = vweird.f32 %v749
      %vm849 = vweird.f32 %v843
      %vm850 = vmor %vm848, %vm849
      %v851 = vsel %vm850, %v843, %v847
      %v852 = vand.u32 2147483647, %v749
      %vm853 = vcmp.eq.f32.partialorder %v852, 8.507059e+37
      %v854 = vand.u32 %v749, 2147483648
      %v855 = vor.u32 1.1754944e-38, %v854
      %v856 = vsel %vm853, %v855, %v851
      %v857 = vmul.f32 2.0, %v856
      %v858 = vrcp.pop %v752
      %v859 = vmul.f32 %v752, %v858
      %v860 = vsub.f32 1.0, %v859
      %v861 = vmul.f32 %v858, %v860
      %v862 = vadd.f32 %v858, %v861
      %vm863 = vweird.f32 %v752
      %vm864 = vweird.f32 %v858
      %vm865 = vmor %vm863, %vm864
      %v866 = vsel %vm865, %v858, %v862
      %v867 = vand.u32 2147483647, %v752
      %vm868 = vcmp.eq.f32.partialorder %v867, 8.507059e+37
      %v869 = vand.u32 %v752, 2147483648
      %v870 = vor.u32 1.1754944e-38, %v869
      %v871 = vsel %vm868, %v870, %v866
      %v872 = vmul.f32 2.0, %v871
      %v873 = vrcp.pop %v755
      %v874 = vmul.f32 %v755, %v873
      %v875 = vsub.f32 1.0, %v874
      %v876 = vmul.f32 %v873, %v875
      %v877 = vadd.f32 %v873, %v876
      %vm878 = vweird.f32 %v755
      %vm879 = vweird.f32 %v873
      %vm880 = vmor %vm878, %vm879
      %v881 = vsel %vm880, %v873, %v877
      %v882 = vand.u32 2147483647, %v755
      %vm883 = vcmp.eq.f32.partialorder %v882, 8.507059e+37
      %v884 = vand.u32 %v755, 2147483648
      %v885 = vor.u32 1.1754944e-38, %v884
      %v886 = vsel %vm883, %v885, %v881
      %v887 = vmul.f32 2.0, %v886
      %v888 = vrcp.pop %v758
      %v889 = vmul.f32 %v758, %v888
      %v890 = vsub.f32 1.0, %v889
      %v891 = vmul.f32 %v888, %v890
      %v892 = vadd.f32 %v888, %v891
      %vm893 = vweird.f32 %v758
      %vm894 = vweird.f32 %v888
      %vm895 = vmor %vm893, %vm894
      %v896 = vsel %vm895, %v888, %v892
      %v897 = vand.u32 2147483647, %v758
      %vm898 = vcmp.eq.f32.partialorder %v897, 8.507059e+37
      %v899 = vand.u32 %v758, 2147483648
      %v900 = vor.u32 1.1754944e-38, %v899
      %v901 = vsel %vm898, %v900, %v896
      %v902 = vmul.f32 2.0, %v901
      %v903 = vrcp.pop %v761
      %v904 = vmul.f32 %v761, %v903
      %v905 = vsub.f32 1.0, %v904
      %v906 = vmul.f32 %v903, %v905
      %v907 = vadd.f32 %v903, %v906
      %vm908 = vweird.f32 %v761
      %vm909 = vweird.f32 %v903
      %vm910 = vmor %vm908, %vm909
      %v911 = vsel %vm910, %v903, %v907
      %v912 = vand.u32 2147483647, %v761
      %vm913 = vcmp.eq.f32.partialorder %v912, 8.507059e+37
      %v914 = vand.u32 %v761, 2147483648
      %v915 = vor.u32 1.1754944e-38, %v914
      %v916 = vsel %vm913, %v915, %v911
      %v917 = vmul.f32 2.0, %v916
      %v918 = vrcp.pop %v764
      %v919 = vmul.f32 %v764, %v918
      %v920 = vsub.f32 1.0, %v919
      %v921 = vmul.f32 %v918, %v920
      %v922 = vadd.f32 %v918, %v921
      %vm923 = vweird.f32 %v764
      %vm924 = vweird.f32 %v918
      %vm925 = vmor %vm923, %vm924
      %v926 = vsel %vm925, %v918, %v922
      %v927 = vand.u32 2147483647, %v764
      %vm928 = vcmp.eq.f32.partialorder %v927, 8.507059e+37
      %v929 = vand.u32 %v764, 2147483648
      %v930 = vor.u32 1.1754944e-38, %v929
      %v931 = vsel %vm928, %v930, %v926
      %v932 = vmul.f32 2.0, %v931
      %v933 = vrcp.pop %v767
      %v934 = vmul.f32 %v767, %v933
      %v935 = vsub.f32 1.0, %v934
      %v936 = vmul.f32 %v933, %v935
      %v937 = vadd.f32 %v933, %v936
      %vm938 = vweird.f32 %v767
      %vm939 = vweird.f32 %v933
      %vm940 = vmor %vm938, %vm939
      %v941 = vsel %vm940, %v933, %v937
      %v942 = vand.u32 2147483647, %v767
      %vm943 = vcmp.eq.f32.partialorder %v942, 8.507059e+37
      %v944 = vand.u32 %v767, 2147483648
      %v945 = vor.u32 1.1754944e-38, %v944
      %v946 = vsel %vm943, %v945, %v941
      %v947 = vmul.f32 2.0, %v946
      %v948 = vrcp.pop %v770
      %v949 = vmul.f32 %v770, %v948
      %v950 = vsub.f32 1.0, %v949
      %v951 = vmul.f32 %v948, %v950
      %v952 = vadd.f32 %v948, %v951
      %vm953 = vweird.f32 %v770
      %vm954 = vweird.f32 %v948
      %vm955 = vmor %vm953, %vm954
      %v956 = vsel %vm955, %v948, %v952
      %v957 = vand.u32 2147483647, %v770
      %vm958 = vcmp.eq.f32.partialorder %v957, 8.507059e+37
      %v959 = vand.u32 %v770, 2147483648
      %v960 = vor.u32 1.1754944e-38, %v959
      %v961 = vsel %vm958, %v960, %v956
      %v962 = vmul.f32 2.0, %v961
      %v963 = vrcp.pop %v773
      %v964 = vmul.f32 %v773, %v963
      %v965 = vsub.f32 1.0, %v964
      %v966 = vmul.f32 %v963, %v965
      %v967 = vadd.f32 %v963, %v966
      %vm968 = vweird.f32 %v773
      %vm969 = vweird.f32 %v963
      %vm970 = vmor %vm968, %vm969
      %v971 = vsel %vm970, %v963, %v967
      %v972 = vand.u32 2147483647, %v773
      %vm973 = vcmp.eq.f32.partialorder %v972, 8.507059e+37
      %v974 = vand.u32 %v773, 2147483648
      %v975 = vor.u32 1.1754944e-38, %v974
      %v976 = vsel %vm973, %v975, %v971
      %v977 = vmul.f32 2.0, %v976
      %v978 = vrcp.pop %v776
      %v979 = vmul.f32 %v776, %v978
      %v980 = vsub.f32 1.0, %v979
      %v981 = vmul.f32 %v978, %v980
      %v982 = vadd.f32 %v978, %v981
      %vm983 = vweird.f32 %v776
      %vm984 = vweird.f32 %v978
      %vm985 = vmor %vm983, %vm984
      %v986 = vsel %vm985, %v978, %v982
      %v987 = vand.u32 2147483647, %v776
      %vm988 = vcmp.eq.f32.partialorder %v987, 8.507059e+37
      %v989 = vand.u32 %v776, 2147483648
      %v990 = vor.u32 1.1754944e-38, %v989
      %v991 = vsel %vm988, %v990, %v986
      %v992 = vmul.f32 2.0, %v991
      %v993 = vrcp.pop %v779
      %v994 = vmul.f32 %v779, %v993
      %v995 = vsub.f32 1.0, %v994
      %v996 = vmul.f32 %v993, %v995
      %v997 = vadd.f32 %v993, %v996
      %vm998 = vweird.f32 %v779
      %vm999 = vweird.f32 %v993
      %vm1000 = vmor %vm998, %vm999
      %v1001 = vsel %vm1000, %v993, %v997
      %v1002 = vand.u32 2147483647, %v779
      %vm1003 = vcmp.eq.f32.partialorder %v1002, 8.507059e+37
      %v1004 = vand.u32 %v779, 2147483648
      %v1005 = vor.u32 1.1754944e-38, %v1004
      %v1006 = vsel %vm1003, %v1005, %v1001
      %v1007 = vmul.f32 2.0, %v1006
      %v1008 = vrcp.pop %v782
      %v1009 = vmul.f32 %v782, %v1008
      %v1010 = vsub.f32 1.0, %v1009
      %v1011 = vmul.f32 %v1008, %v1010
      %v1012 = vadd.f32 %v1008, %v1011
      %vm1013 = vweird.f32 %v782
      %vm1014 = vweird.f32 %v1008
      %vm1015 = vmor %vm1013, %vm1014
      %v1016 = vsel %vm1015, %v1008, %v1012
      %v1017 = vand.u32 2147483647, %v782
      %vm1018 = vcmp.eq.f32.partialorder %v1017, 8.507059e+37
      %v1019 = vand.u32 %v782, 2147483648
      %v1020 = vor.u32 1.1754944e-38, %v1019
      %v1021 = vsel %vm1018, %v1020, %v1016
      %v1022 = vmul.f32 2.0, %v1021
      %v1023 = vld [vmem:[%s304] sm:$0xff]
      %v1024 = vld [vmem:[%s304 + $0x8] sm:$0xff]
      %v1025 = vld [vmem:[%s304 + $0x10] sm:$0xff]
      %v1026 = vld [vmem:[%s304 + $0x18] sm:$0xff]
      %v1027 = vld [vmem:[%s304 + $0x20] sm:$0xff]
      %v1028 = vld [vmem:[%s304 + $0x28] sm:$0xff]
      %v1029 = vld [vmem:[%s304 + $0x30] sm:$0xff]
      %v1030 = vld [vmem:[%s304 + $0x38] sm:$0xff]
      %v1031 = vld [vmem:[%s304 + $0x40] sm:$0xff]
      %v1032 = vld [vmem:[%s304 + $0x48] sm:$0xff]
      %v1033 = vld [vmem:[%s304 + $0x50] sm:$0xff]
      %v1034 = vld [vmem:[%s304 + $0x58] sm:$0xff]
      %v1035 = vld [vmem:[%s304 + $0x60] sm:$0xff]
      %v1036 = vld [vmem:[%s304 + $0x68] sm:$0xff]
      %v1037 = vld [vmem:[%s304 + $0x70] sm:$0xff]
      %v1038 = vld [vmem:[%s304 + $0x78] sm:$0xff]
      %v1039 = vld [vmem:[%s304 + $0x80] sm:$0xff]
      %v1040 = vld [vmem:[%s304 + $0x88] sm:$0xff]
      %v1041 = vld [vmem:[%s304 + $0x90] sm:$0xff]
      %v1042 = vld [vmem:[%s304 + $0x98] sm:$0xff]
      %v1043 = vld [vmem:[%s304 + $0xa0] sm:$0xff]
      %v1044 = vld [vmem:[%s304 + $0xa8] sm:$0xff]
      %v1045 = vld [vmem:[%s304 + $0xb0] sm:$0xff]
      %v1046 = vld [vmem:[%s304 + $0xb8] sm:$0xff]
      %v1047 = vld [vmem:[%s304 + $0xc0] sm:$0xff]
      %v1048 = vld [vmem:[%s304 + $0xc8] sm:$0xff]
      %v1049 = vld [vmem:[%s304 + $0xd0] sm:$0xff]
      %v1050 = vld [vmem:[%s304 + $0xd8] sm:$0xff]
      %v1051 = vld [vmem:[%s304 + $0xe0] sm:$0xff]
      %v1052 = vld [vmem:[%s304 + $0xe8] sm:$0xff]
      %v1053 = vld [vmem:[%s304 + $0xf0] sm:$0xff]
      %v1054 = vld [vmem:[%s304 + $0xf8] sm:$0xff]
      %v1055 = vadd.s32 %v1023, 2147483648
      %vm1057 = vcmp.lt.s32.totalorder %v1055, 0
      %v1058 = vadd.s32 %v1024, 2147483648
      %vm1060 = vcmp.lt.s32.totalorder %v1058, 0
      %v1061 = vadd.s32 %v1025, 2147483648
      %vm1063 = vcmp.lt.s32.totalorder %v1061, 0
      %v1064 = vadd.s32 %v1026, 2147483648
      %vm1066 = vcmp.lt.s32.totalorder %v1064, 0
      %v1067 = vadd.s32 %v1027, 2147483648
      %vm1069 = vcmp.lt.s32.totalorder %v1067, 0
      %v1070 = vadd.s32 %v1028, 2147483648
      %vm1072 = vcmp.lt.s32.totalorder %v1070, 0
      %v1073 = vadd.s32 %v1029, 2147483648
      %vm1075 = vcmp.lt.s32.totalorder %v1073, 0
      %v1076 = vadd.s32 %v1030, 2147483648
      %vm1078 = vcmp.lt.s32.totalorder %v1076, 0
      %v1079 = vadd.s32 %v1031, 2147483648
      %vm1081 = vcmp.lt.s32.totalorder %v1079, 0
      %v1082 = vadd.s32 %v1032, 2147483648
      %vm1084 = vcmp.lt.s32.totalorder %v1082, 0
      %v1085 = vadd.s32 %v1033, 2147483648
      %vm1087 = vcmp.lt.s32.totalorder %v1085, 0
      %v1088 = vadd.s32 %v1034, 2147483648
      %vm1090 = vcmp.lt.s32.totalorder %v1088, 0
      %v1091 = vadd.s32 %v1035, 2147483648
      %vm1093 = vcmp.lt.s32.totalorder %v1091, 0
      %v1094 = vadd.s32 %v1036, 2147483648
      %vm1096 = vcmp.lt.s32.totalorder %v1094, 0
      %v1097 = vadd.s32 %v1037, 2147483648
      %vm1099 = vcmp.lt.s32.totalorder %v1097, 0
      %v1100 = vadd.s32 %v1038, 2147483648
      %vm1102 = vcmp.lt.s32.totalorder %v1100, 0
      %v1103 = vadd.s32 %v1039, 2147483648
      %vm1105 = vcmp.lt.s32.totalorder %v1103, 0
      %v1106 = vadd.s32 %v1040, 2147483648
      %vm1108 = vcmp.lt.s32.totalorder %v1106, 0
      %v1109 = vadd.s32 %v1041, 2147483648
      %vm1111 = vcmp.lt.s32.totalorder %v1109, 0
      %v1112 = vadd.s32 %v1042, 2147483648
      %vm1114 = vcmp.lt.s32.totalorder %v1112, 0
      %v1115 = vadd.s32 %v1043, 2147483648
      %vm1117 = vcmp.lt.s32.totalorder %v1115, 0
      %v1118 = vadd.s32 %v1044, 2147483648
      %vm1120 = vcmp.lt.s32.totalorder %v1118, 0
      %v1121 = vadd.s32 %v1045, 2147483648
      %vm1123 = vcmp.lt.s32.totalorder %v1121, 0
      %v1124 = vadd.s32 %v1046, 2147483648
      %vm1126 = vcmp.lt.s32.totalorder %v1124, 0
      %v1127 = vadd.s32 %v1047, 2147483648
      %vm1129 = vcmp.lt.s32.totalorder %v1127, 0
      %v1130 = vadd.s32 %v1048, 2147483648
      %vm1132 = vcmp.lt.s32.totalorder %v1130, 0
      %v1133 = vadd.s32 %v1049, 2147483648
      %vm1135 = vcmp.lt.s32.totalorder %v1133, 0
      %v1136 = vadd.s32 %v1050, 2147483648
      %vm1138 = vcmp.lt.s32.totalorder %v1136, 0
      %v1139 = vadd.s32 %v1051, 2147483648
      %vm1141 = vcmp.lt.s32.totalorder %v1139, 0
      %v1142 = vadd.s32 %v1052, 2147483648
      %vm1144 = vcmp.lt.s32.totalorder %v1142, 0
      %v1145 = vadd.s32 %v1053, 2147483648
      %vm1147 = vcmp.lt.s32.totalorder %v1145, 0
      %v1148 = vadd.s32 %v1054, 2147483648
      %vm1150 = vcmp.lt.s32.totalorder %v1148, 0
      %v1151 = vmul.f32 %v672, %v797
      %v1152 = vmul.f32 %v674, %v797
      %v1153 = vmul.f32 %v676, %v812
      %v1154 = vmul.f32 %v678, %v812
      %v1155 = vmul.f32 %v680, %v827
      %v1156 = vmul.f32 %v682, %v827
      %v1157 = vmul.f32 %v684, %v842
      %v1158 = vmul.f32 %v686, %v842
      %v1159 = vmul.f32 %v688, %v857
      %v1160 = vmul.f32 %v690, %v857
      %v1161 = vmul.f32 %v692, %v872
      %v1162 = vmul.f32 %v694, %v872
      %v1163 = vmul.f32 %v696, %v887
      %v1164 = vmul.f32 %v698, %v887
      %v1165 = vmul.f32 %v700, %v902
      %v1166 = vmul.f32 %v702, %v902
      %v1167 = vmul.f32 %v704, %v917
      %v1168 = vmul.f32 %v706, %v917
      %v1169 = vmul.f32 %v708, %v932
      %v1170 = vmul.f32 %v710, %v932
      %v1171 = vmul.f32 %v712, %v947
      %v1172 = vmul.f32 %v714, %v947
      %v1173 = vmul.f32 %v716, %v962
      %v1174 = vmul.f32 %v718, %v962
      %v1175 = vmul.f32 %v720, %v977
      %v1176 = vmul.f32 %v722, %v977
      %v1177 = vmul.f32 %v724, %v992
      %v1178 = vmul.f32 %v726, %v992
      %v1179 = vmul.f32 %v728, %v1007
      %v1180 = vmul.f32 %v730, %v1007
      %v1181 = vmul.f32 %v732, %v1022
      %v1182 = vmul.f32 %v734, %v1022
      %v1183 = vsel %vm1057, %v1151, 0.0
      %v1184 = vsel %vm1060, %v1152, 0.0
      %v1185 = vsel %vm1063, %v1153, 0.0
      %v1186 = vsel %vm1066, %v1154, 0.0
      %v1187 = vsel %vm1069, %v1155, 0.0
      %v1188 = vsel %vm1072, %v1156, 0.0
      %v1189 = vsel %vm1075, %v1157, 0.0
      %v1190 = vsel %vm1078, %v1158, 0.0
      %v1191 = vsel %vm1081, %v1159, 0.0
      %v1192 = vsel %vm1084, %v1160, 0.0
      %v1193 = vsel %vm1087, %v1161, 0.0
      %v1194 = vsel %vm1090, %v1162, 0.0
      %v1195 = vsel %vm1093, %v1163, 0.0
      %v1196 = vsel %vm1096, %v1164, 0.0
      %v1197 = vsel %vm1099, %v1165, 0.0
      %v1198 = vsel %vm1102, %v1166, 0.0
      %v1199 = vsel %vm1105, %v1167, 0.0
      %v1200 = vsel %vm1108, %v1168, 0.0
      %v1201 = vsel %vm1111, %v1169, 0.0
      %v1202 = vsel %vm1114, %v1170, 0.0
      %v1203 = vsel %vm1117, %v1171, 0.0
      %v1204 = vsel %vm1120, %v1172, 0.0
      %v1205 = vsel %vm1123, %v1173, 0.0
      %v1206 = vsel %vm1126, %v1174, 0.0
      %v1207 = vsel %vm1129, %v1175, 0.0
      %v1208 = vsel %vm1132, %v1176, 0.0
      %v1209 = vsel %vm1135, %v1177, 0.0
      %v1210 = vsel %vm1138, %v1178, 0.0
      %v1211 = vsel %vm1141, %v1179, 0.0
      %v1212 = vsel %vm1144, %v1180, 0.0
      %v1213 = vsel %vm1147, %v1181, 0.0
      %v1214 = vsel %vm1150, %v1182, 0.0
      %v1215 = vpack.c.bf16 %v1185, %v1183
      %v1216 = vpack.c.bf16 %v1186, %v1184
      %v1217 = vpack.c.bf16 %v1189, %v1187
      %v1218 = vpack.c.bf16 %v1190, %v1188
      %v1219 = vpack.c.bf16 %v1193, %v1191
      %v1220 = vpack.c.bf16 %v1194, %v1192
      %v1221 = vpack.c.bf16 %v1197, %v1195
      %v1222 = vpack.c.bf16 %v1198, %v1196
      %v1223 = vpack.c.bf16 %v1201, %v1199
      %v1224 = vpack.c.bf16 %v1202, %v1200
      %v1225 = vpack.c.bf16 %v1205, %v1203
      %v1226 = vpack.c.bf16 %v1206, %v1204
      %v1227 = vpack.c.bf16 %v1209, %v1207
      %v1228 = vpack.c.bf16 %v1210, %v1208
      %v1229 = vpack.c.bf16 %v1213, %v1211
      %v1230 = vpack.c.bf16 %v1214, %v1212
      %v1231 = vpack.c.bf16 %v365, %v364
      %v1232 = vpack.c.bf16 %v367, %v366
      %v1233 = vpack.c.bf16 %v369, %v368
      %v1234 = vpack.c.bf16 %v371, %v370
      %v1235 = vpack.c.bf16 %v373, %v372
      %v1236 = vpack.c.bf16 %v375, %v374
      %v1237 = vpack.c.bf16 %v377, %v376
      %v1238 = vpack.c.bf16 %v379, %v378
      %v1239 = vpack.c.bf16 %v381, %v380
      %v1240 = vpack.c.bf16 %v383, %v382
      %v1241 = vpack.c.bf16 %v385, %v384
      %v1242 = vpack.c.bf16 %v387, %v386
      %v1243 = vpack.c.bf16 %v389, %v388
      %v1244 = vpack.c.bf16 %v391, %v390
      %v1245 = vpack.c.bf16 %v393, %v392
      %v1246 = vpack.c.bf16 %v395, %v394
      %1247 = vmatpush.bf16.msra.mxu0 %v1238
      %1248 = vmatpush.bf16.msra.mxu0 %v1237
      %1249 = vmatpush.bf16.msra.mxu0 %v1236
      %1250 = vmatpush.bf16.msra.mxu0 %v1235
      %1251 = vmatpush.bf16.msra.mxu0 %v1234
      %1252 = vmatpush.bf16.msra.mxu0 %v1233
      %1253 = vmatpush.bf16.msra.mxu0 %v1232
      %1254 = vmatpush.bf16.msra.mxu0 %v1231
      %1255 = vmatmul.bf16.gmra.mxu0 %v1215
      %v1256 = vpop.f32.mrf.mxu0
      %v1257 = vadd.f32 0.0, %v1256
      %v1258 = vpop.f32.mrf.mxu0
      %v1259 = vadd.f32 0.0, %v1258
      %1260 = vmatmul.bf16.gmra.mxu0 %v1217
      %v1261 = vpop.f32.mrf.mxu0
      %v1262 = vadd.f32 0.0, %v1261
      %v1263 = vpop.f32.mrf.mxu0
      %v1264 = vadd.f32 0.0, %v1263
      %1265 = vmatmul.bf16.gmra.mxu0 %v1219
      %v1266 = vpop.f32.mrf.mxu0
      %v1267 = vadd.f32 0.0, %v1266
      %v1268 = vpop.f32.mrf.mxu0
      %v1269 = vadd.f32 0.0, %v1268
      %1270 = vmatmul.bf16.gmra.mxu0 %v1221
      %v1271 = vpop.f32.mrf.mxu0
      %v1272 = vadd.f32 0.0, %v1271
      %v1273 = vpop.f32.mrf.mxu0
      %v1274 = vadd.f32 0.0, %v1273
      %1275 = vmatmul.bf16.gmra.mxu0 %v1223
      %v1276 = vpop.f32.mrf.mxu0
      %v1277 = vadd.f32 0.0, %v1276
      %v1278 = vpop.f32.mrf.mxu0
      %v1279 = vadd.f32 0.0, %v1278
      %1280 = vmatmul.bf16.gmra.mxu0 %v1225
      %v1281 = vpop.f32.mrf.mxu0
      %v1282 = vadd.f32 0.0, %v1281
      %v1283 = vpop.f32.mrf.mxu0
      %v1284 = vadd.f32 0.0, %v1283
      %1285 = vmatmul.bf16.gmra.mxu0 %v1227
      %v1286 = vpop.f32.mrf.mxu0
      %v1287 = vadd.f32 0.0, %v1286
      %v1288 = vpop.f32.mrf.mxu0
      %v1289 = vadd.f32 0.0, %v1288
      %1290 = vmatmul.bf16.gmra.mxu0 %v1229
      %v1291 = vpop.f32.mrf.mxu0
      %v1292 = vadd.f32 0.0, %v1291
      %v1293 = vpop.f32.mrf.mxu0
      %v1294 = vadd.f32 0.0, %v1293
      %1295 = vdwg.mxu0
      %1296 = vmatpush.bf16.msra.mxu0 %v1246
      %1297 = vmatpush.bf16.msra.mxu0 %v1245
      %1298 = vmatpush.bf16.msra.mxu0 %v1244
      %1299 = vmatpush.bf16.msra.mxu0 %v1243
      %1300 = vmatpush.bf16.msra.mxu0 %v1242
      %1301 = vmatpush.bf16.msra.mxu0 %v1241
      %1302 = vmatpush.bf16.msra.mxu0 %v1240
      %1303 = vmatpush.bf16.msra.mxu0 %v1239
      %1304 = vmatmul.bf16.gmra.mxu0 %v1216
      %v1305 = vpop.f32.mrf.mxu0
      %v1306 = vadd.f32 %v1257, %v1305
      %v1307 = vpop.f32.mrf.mxu0
      %v1308 = vadd.f32 %v1259, %v1307
      %1309 = vmatmul.bf16.gmra.mxu0 %v1218
      %v1310 = vpop.f32.mrf.mxu0
      %v1311 = vadd.f32 %v1262, %v1310
      %v1312 = vpop.f32.mrf.mxu0
      %v1313 = vadd.f32 %v1264, %v1312
      %1314 = vmatmul.bf16.gmra.mxu0 %v1220
      %v1315 = vpop.f32.mrf.mxu0
      %v1316 = vadd.f32 %v1267, %v1315
      %v1317 = vpop.f32.mrf.mxu0
      %v1318 = vadd.f32 %v1269, %v1317
      %1319 = vmatmul.bf16.gmra.mxu0 %v1222
      %v1320 = vpop.f32.mrf.mxu0
      %v1321 = vadd.f32 %v1272, %v1320
      %v1322 = vpop.f32.mrf.mxu0
      %v1323 = vadd.f32 %v1274, %v1322
      %1324 = vmatmul.bf16.gmra.mxu0 %v1224
      %v1325 = vpop.f32.mrf.mxu0
      %v1326 = vadd.f32 %v1277, %v1325
      %v1327 = vpop.f32.mrf.mxu0
      %v1328 = vadd.f32 %v1279, %v1327
      %1329 = vmatmul.bf16.gmra.mxu0 %v1226
      %v1330 = vpop.f32.mrf.mxu0
      %v1331 = vadd.f32 %v1282, %v1330
      %v1332 = vpop.f32.mrf.mxu0
      %v1333 = vadd.f32 %v1284, %v1332
      %1334 = vmatmul.bf16.gmra.mxu0 %v1228
      %v1335 = vpop.f32.mrf.mxu0
      %v1336 = vadd.f32 %v1287, %v1335
      %v1337 = vpop.f32.mrf.mxu0
      %v1338 = vadd.f32 %v1289, %v1337
      %1339 = vmatmul.bf16.gmra.mxu0 %v1230
      %v1340 = vpop.f32.mrf.mxu0
      %v1341 = vadd.f32 %v1292, %v1340
      %v1342 = vpop.f32.mrf.mxu0
      %v1343 = vadd.f32 %v1294, %v1342
      %1344 = vdwg.mxu0
      %1345 = vst.msk [vmem:[%s314] sm:$0xff] %vm420, %v1306
      %1346 = vst.msk [vmem:[%s314 + $0x8] sm:$0xff] %vm420, %v1308
      %1347 = vst.msk [vmem:[%s314 + $0x10] sm:$0xff] %vm420, %v1311
      %1348 = vst.msk [vmem:[%s314 + $0x18] sm:$0xff] %vm420, %v1313
      %1349 = vst.msk [vmem:[%s314 + $0x20] sm:$0xff] %vm420, %v1316
      %1350 = vst.msk [vmem:[%s314 + $0x28] sm:$0xff] %vm420, %v1318
      %1351 = vst.msk [vmem:[%s314 + $0x30] sm:$0xff] %vm420, %v1321
      %1352 = vst.msk [vmem:[%s314 + $0x38] sm:$0xff] %vm420, %v1323
      %1353 = vst.msk [vmem:[%s314 + $0x40] sm:$0xff] %vm420, %v1326
      %1354 = vst.msk [vmem:[%s314 + $0x48] sm:$0xff] %vm420, %v1328
      %1355 = vst.msk [vmem:[%s314 + $0x50] sm:$0xff] %vm420, %v1331
      %1356 = vst.msk [vmem:[%s314 + $0x58] sm:$0xff] %vm420, %v1333
      %1357 = vst.msk [vmem:[%s314 + $0x60] sm:$0xff] %vm420, %v1336
      %1358 = vst.msk [vmem:[%s314 + $0x68] sm:$0xff] %vm420, %v1338
      %1359 = vst.msk [vmem:[%s314 + $0x70] sm:$0xff] %vm420, %v1341
      %1360 = vst.msk [vmem:[%s314 + $0x78] sm:$0xff] %vm420, %v1343
      %s1361 = smul.u32 16, %s20
      %p1362 = scmp.lt.s32.totalorder %s19, 1
      %s1363 = scalar_select %p1362, %s19, 1
      %p1364 = scmp.lt.s32.totalorder %s1361, 31
      %s1365 = scalar_select %p1364, %s1361, 31
      %s1366 = smul.addr %s1363, 32
      %s1367 = sadd.s32 %s1365, %s1366
      %s1368 = smul.addr %s1367, 8
      %s1369 = scalar_lea.vmem %s4, %s1368
      // Predicated region
      $region37: #{tpu_custom_call.1} parent=35 // pred_check
        %p1370 = pneg %p155
      $region38: #{tpu_custom_call.1} parent=35 // pred_check_branch
        %1372 = sbr.rel (%p1370) target = $region40
      $region39: #{tpu_custom_call.1} parent=35 // pred_region
        %s1373 = smul.u32 16, %s20
      $region40: #{tpu_custom_call.1} parent=35 // pred_fallthru
        _
    $region36: #{tpu_custom_call.1} parent=5 // pred_fallthru
      _
    %p1374 = scmp.le.s32.totalorder 2, %s10
    // Predicated region
    $region41: #{tpu_custom_call.1} parent=5 // pred_check
      %p1375 = pneg %p1374
    $region42: #{tpu_custom_call.1} parent=5 // pred_check_branch
      %1377 = sbr.rel (%p1375) target = $region44
    $region43: #{tpu_custom_call.1} parent=5 // pred_region
      %s1378 = ssub.s32 %s10, 2
      // Predicated region
      $region45: #{tpu_custom_call.1} parent=43 // pred_check
        %p1379 = pneg %p161
      $region46: #{tpu_custom_call.1} parent=43 // pred_check_branch
        %1381 = sbr.rel (%p1379) target = $region48
      $region47: #{tpu_custom_call.1} parent=43 // pred_region
        %s1382 = smul.u32 16, %s22
        %p1383 = scmp.lt.s32.totalorder %s21, 1
        %s1384 = scalar_select %p1383, %s21, 1
        %p1385 = scmp.lt.s32.totalorder %s1382, 31
        %s1386 = scalar_select %p1385, %s1382, 31
        %s1387 = smul.addr %s1384, 32
        %s1388 = sadd.s32 %s1386, %s1387
        %s1389 = smul.addr %s1388, 8
        %s1390 = scalar_lea.vmem %s4, %s1389
      $region48: #{tpu_custom_call.1} parent=43 // pred_fallthru
        _
    $region44: #{tpu_custom_call.1} parent=5 // pred_fallthru
      _
  $region6: #{tpu_custom_call.1} parent=0 // loop_footer
    %s14 = sadd.s32 1, %s10
  $region7: #{tpu_custom_call.1} parent=0 // loop_footer_branch
    %9 = sbr.rel target = $region3
  $region8: #{tpu_custom_call.1} parent=0 // loop_exit
    _

</llo_original>
